<compile_context>
chip_gen: v6e
topology: v6e:2x2x1
jax: 0.10.0
libtpu: 0.0.40
codegen_flags: <defaults>
</compile_context>

<pallas_src>
from functools import partial

import jax
import jax.numpy as jnp
from jax.experimental import pallas as pl
from jax.experimental.pallas import tpu as pltpu


# --------------------------------------------------------------------------- kernel

def _dout_seq_kernel(x_ref, w_ref, sd0_ref, out_ref, v_ref, *, dt_tau):
    """One grid step == one timestep.

    x_ref   : (1, B, Cin_total)  activations for this step (streamed)
    w_ref   : (Cin_total, Wp)    augmented block-diag weight [W_bd | W_bd @ C] (resident)
    sd0_ref : (B, Wp)            initial augmented state (resident, read at t == 0)
    out_ref : (1, B, Wp)         per-step slab [v | z] (lane-dense, 128-wide)
    v_ref   : (B, Wp) VMEM       augmented state carried across grid steps
    """
    t = pl.program_id(0)

    @pl.when(t == 0)
    def _():
        v_ref[...] = sd0_ref[...]

    # One MXU pass for all groups + the folded 1/G combine:
    #   (B, Cin_total) @ (Cin_total, Wp) -> (B, Wp)
    i_syn = jnp.dot(x_ref[0], w_ref[...], preferred_element_type=jnp.float32)

    # DENDCell: leaky dendritic integration (f32 elementwise, VPU).
    v = v_ref[...]
    v_new = v + dt_tau * (i_syn - v)

    v_ref[...] = v_new
    out_ref[0] = v_new


# ------------------------------------------------------------------ packing helpers

def _round_up_128(n):
    return max(128, ((n + 127) // 128) * 128)


def pack_weights(weights, out_channels):
    """One-time preprocessing (NOT on the per-step path).

    weights: list of per-group (Cin_i, Cout) matrices.
    Returns (w_aug, C):
      w_aug : (Cin_total, Wp) = [block_diag(W_i) | block_diag(W_i) @ C], zero-padded
              on the lane axis to a multiple of 128.
      C     : (G*Cout, Cout) combine matrix, vstack([I, I/G, ..., I/G]).
    """
    G = len(weights)
    cin_total = int(sum(int(w.shape[0]) for w in weights))
    gc = G * out_channels

    w_bd = jnp.zeros((cin_total, gc), jnp.float32)
    off = 0
    for i, w in enumerate(weights):
        w_bd = w_bd.at[
            off:off + w.shape[0], i * out_channels:(i + 1) * out_channels
        ].set(w.astype(jnp.float32))
        off += int(w.shape[0])

    eye = jnp.eye(out_channels, dtype=jnp.float32)
    C = jnp.concatenate([eye] + [eye / G] * (G - 1), axis=0)   # (G*Cout, Cout)

    w_aug = jnp.concatenate([w_bd, w_bd @ C], axis=1)          # (Cin_total, (G+1)*Cout)
    w_pad = _round_up_128(w_aug.shape[1])
    if w_pad != w_aug.shape[1]:
        w_aug = jnp.pad(w_aug, ((0, 0), (0, w_pad - w_aug.shape[1])))
    return w_aug, C


def pack_state(sd_list, C, w_pad):
    """Pack a per-group state list into the augmented (B, Wp) slab [v | v@C]."""
    sd_cat = jnp.concatenate([s.astype(jnp.float32) for s in sd_list], axis=1)
    sd_aug = jnp.concatenate([sd_cat, sd_cat @ C], axis=1)
    if w_pad != sd_aug.shape[1]:
        sd_aug = jnp.pad(sd_aug, ((0, 0), (0, w_pad - sd_aug.shape[1])))
    return sd_aug


# ------------------------------------------------------------------------- wrappers

def dout_sequence(x_seq, sd0_aug, w_aug, *, dt, tau_inv, matmul_dtype=jnp.float32):
    """Run T timesteps of DOutWrapper3 in ONE pallas_call.

    x_seq   : (T, B, Cin_total) packed activations
    sd0_aug : (B, Wp) packed augmented initial state
    w_aug   : (Cin_total, Wp) packed augmented weight
    Returns (T, B, Wp) slabs; slab[t, :, G*Cout:(G+1)*Cout] is z_t,
    slab[-1] is the packed state to feed into the next call.
    """
    T, B, cin_total = x_seq.shape
    w_pad = w_aug.shape[1]

    x_seq = x_seq.astype(matmul_dtype)       # bf16 on v6e/v7x: single MXU pass, half DMA
    w_aug = w_aug.astype(matmul_dtype)
    sd0_aug = sd0_aug.astype(jnp.float32)    # state / elementwise math stays f32

    kernel = partial(_dout_seq_kernel, dt_tau=float(dt) * float(tau_inv))

    return pl.pallas_call(
        kernel,
        out_shape=jax.ShapeDtypeStruct((T, B, w_pad), jnp.float32),
        grid_spec=pltpu.PrefetchScalarGridSpec(
            num_scalar_prefetch=0,
            grid=(T,),
            in_specs=[
                # stream one timestep of activations per grid step
                pl.BlockSpec((1, B, cin_total), lambda t: (t, 0, 0)),
                # weight resident in VMEM (constant index -> DMA'd once)
                pl.BlockSpec((cin_total, w_pad), lambda t: (0, 0)),
                # initial state resident (read only at t == 0)
                pl.BlockSpec((B, w_pad), lambda t: (0, 0)),
            ],
            # lane-dense 128-wide slab, one unmasked store + one DMA per step
            out_specs=pl.BlockSpec((1, B, w_pad), lambda t: (t, 0, 0)),
            scratch_shapes=[pltpu.VMEM((B, w_pad), jnp.float32)],
        ),
        compiler_params=pltpu.CompilerParams(
            # time axis carries state -> sequential; do NOT mark it parallel.
            dimension_semantics=("arbitrary",),
        ),
    )(x_seq, w_aug, sd0_aug)


def dout_wrapper3(groups, sd, w_aug, C, *, dt, tau_inv, out_channels,
                  matmul_dtype=jnp.float32):
    """Single forward step with the original module's (groups, sd) -> (z, sd_o) API.

    For repeated stepping prefer dout_sequence with packed state (no per-step
    pack/unpack); this wrapper exists to mirror the PyTorch forward exactly.
    """
    G = len(groups)
    x = jnp.concatenate([g.astype(jnp.float32) for g in groups], axis=1)[None]
    sd_aug = pack_state(sd, C, w_aug.shape[1])
    slab = dout_sequence(x, sd_aug, w_aug, dt=dt, tau_inv=tau_inv,
                         matmul_dtype=matmul_dtype)[0]
    z = slab[:, G * out_channels:(G + 1) * out_channels]
    sd_o = [slab[:, i * out_channels:(i + 1) * out_channels] for i in range(G)]
    return z, sd_o


# ------------------------------------------------------------------------ reference

def _dend_ref(i_syn, v, dt, tau_inv):
    v_new = v + dt * tau_inv * (i_syn - v)
    return v_new, v_new


def _reference_step(groups, sd, weights, dt, tau_inv):
    G = len(groups)
    sd_o = [None] * G
    x0, sd_o[0] = _dend_ref(groups[0] @ weights[0], sd[0], dt, tau_inv)
    for i in range(1, G):
        temp, sd_o[i] = _dend_ref(groups[i] @ weights[i], sd[i], dt, tau_inv)
        x0 = x0 + temp / G
    return x0, sd_o


def _reference_sequence(groups_seq, sd0, weights, dt, tau_inv):
    T = groups_seq[0].shape[0]
    sd = list(sd0)
    zs = []
    for t in range(T):
        z, sd = _reference_step([g[t] for g in groups_seq], sd, weights, dt, tau_inv)
        zs.append(z)
    return jnp.stack(zs), sd


# ----------------------------------------------------------------------------- main

if __name__ == "__main__":
    in_channels = [16, 24, 32]
    out_channels = 32
    G = len(in_channels)
    batch = 4
    T = 8
    dt = 1e-3
    tau_inv = 200.0  # from lifparams

    key = jax.random.PRNGKey(0)
    k_x, k_w, k_s = jax.random.split(key, 3)

    wkeys = jax.random.split(k_w, G)
    xkeys = jax.random.split(k_x, G)
    skeys = jax.random.split(k_s, G)

    weights, groups_seq, sd0 = [], [], []
    for i, cin in enumerate(in_channels):
        bound = 1.0 / (cin ** 0.5)  # torch.nn.Linear init, stored here as (Cin, Cout)
        weights.append(jax.random.uniform(wkeys[i], (cin, out_channels),
                                          minval=-bound, maxval=bound,
                                          dtype=jnp.float32))
        groups_seq.append(jax.random.normal(xkeys[i], (T, batch, cin), jnp.float32))
        sd0.append(jax.random.normal(skeys[i], (batch, out_channels), jnp.float32))

    # One-time packing (hoisted off the per-step path).
    w_aug, C = pack_weights(weights, out_channels)
    w_pad = w_aug.shape[1]
    sd0_aug = pack_state(sd0, C, w_pad)
    x_seq = jnp.concatenate(groups_seq, axis=-1)        # (T, B, Cin_total)

    gc = G * out_channels

    # ---- f32 path: T-step kernel, strict check against the step-by-step reference.
    run_f32 = jax.jit(partial(dout_sequence, dt=dt, tau_inv=tau_inv,
                              matmul_dtype=jnp.float32))
    out = jax.block_until_ready(run_f32(x_seq, sd0_aug, w_aug))

    z_seq = out[:, :, gc:gc + out_channels]                                  # (T,B,Cout)
    sd_final = [out[-1, :, i * out_channels:(i + 1) * out_channels] for i in range(G)]

    z_ref, sd_ref = _reference_sequence(groups_seq, sd0, weights, dt, tau_inv)
    assert jnp.allclose(z_seq, z_ref, atol=1e-5, rtol=1e-5), "sequence z mismatch"
    for a, b in zip(sd_final, sd_ref):
        assert jnp.allclose(a, b, atol=1e-5, rtol=1e-5), "sequence state mismatch"

    # ---- single-step module-style forward parity (same signature as PyTorch forward).
    step = jax.jit(partial(dout_wrapper3, dt=dt, tau_inv=tau_inv,
                           out_channels=out_channels))
    groups_t0 = [g[0] for g in groups_seq]
    z1, sd1 = step(groups_t0, sd0, w_aug, C)
    z1 = jax.block_until_ready(z1)
    z1_ref, sd1_ref = _reference_step(groups_t0, sd0, weights, dt, tau_inv)
    assert jnp.allclose(z1, z1_ref, atol=1e-5, rtol=1e-5), "step z mismatch"
    for a, b in zip(sd1, sd1_ref):
        assert jnp.allclose(a, b, atol=1e-5, rtol=1e-5), "step state mismatch"

    # ---- bf16 MXU-operand path (v6e / v7x): loose check only (bf16 rounding).
    run_bf16 = jax.jit(partial(dout_sequence, dt=dt, tau_inv=tau_inv,
                               matmul_dtype=jnp.bfloat16))
    out_bf16 = jax.block_until_ready(run_bf16(x_seq, sd0_aug, w_aug))
    assert jnp.allclose(out_bf16, out, atol=1e-1, rtol=1e-1), "bf16 path diverged"

    print("KERNEL_OK")
</pallas_src>

<mosaic_0001>
module attributes {stable_mosaic.version = 11 : i64} {
  func.func @_dout_seq_kernel(%arg0: i32, %arg1: memref<1x4x72xf32, #tpu.memory_space<vmem>>, %arg2: memref<72x128xf32, #tpu.memory_space<vmem>>, %arg3: memref<4x128xf32, #tpu.memory_space<vmem>>, %arg4: memref<1x4x128xf32, #tpu.memory_space<vmem>>, %arg5: memref<4x128xf32, #tpu.memory_space<vmem>>) attributes {dimension_semantics = [#tpu.dimension_semantics<arbitrary>], iteration_bounds = array<i64: 8>, scalar_prefetch = 0 : i64, scratch_operands = 1 : i64, tpu.core_type = #tpu.core_type<tc>, window_params = [{transform_indices = @transform_0, window_bounds = array<i64: 1, 4, 72>}, {pipeline_mode = #tpu.pipeline_mode<synchronous>, transform_indices = @transform_1, window_bounds = array<i64: 72, 128>}, {pipeline_mode = #tpu.pipeline_mode<synchronous>, transform_indices = @transform_2, window_bounds = array<i64: 4, 128>}, {transform_indices = @transform_3, window_bounds = array<i64: 1, 4, 128>}]} {
    %c0_i32 = arith.constant 0 : i32
    %0 = arith.cmpi eq, %arg0, %c0_i32 : i32
    %1 = arith.extui %0 : i1 to i32
    %c0_i32_0 = arith.constant 0 : i32
    %2 = arith.cmpi ne, %1, %c0_i32_0 : i32
    scf.if %2 {
      %c0_13 = arith.constant 0 : index
      %c0_14 = arith.constant 0 : index
      %16 = vector.load %arg3[%c0_13, %c0_14] : memref<4x128xf32, #tpu.memory_space<vmem>>, vector<4x128xf32>
      %c0_15 = arith.constant 0 : index
      %c0_16 = arith.constant 0 : index
      %17 = vector.load %arg5[%c0_15, %c0_16] : memref<4x128xf32, #tpu.memory_space<vmem>>, vector<4x128xf32>
      tpu.vector_store %arg5[%c0_15, %c0_16], %16 {strides = array<i32>} : memref<4x128xf32, #tpu.memory_space<vmem>>, vector<4x128xf32>,
    } else {
    }
    %c0 = arith.constant 0 : index
    %c0_1 = arith.constant 0 : index
    %c0_2 = arith.constant 0 : index
    %3 = vector.load %arg1[%c0, %c0_1, %c0_2] : memref<1x4x72xf32, #tpu.memory_space<vmem>>, vector<1x4x72xf32>
    %4 = vector.shape_cast %3 : vector<1x4x72xf32> to vector<4x72xf32>
    %c0_3 = arith.constant 0 : index
    %c0_4 = arith.constant 0 : index
    %5 = vector.load %arg2[%c0_3, %c0_4] : memref<72x128xf32, #tpu.memory_space<vmem>>, vector<72x128xf32>
    %cst = arith.constant dense<0.000000e+00> : vector<4x128xf32>
    %6 = tpu.matmul %4, %5, %cst {dimension_numbers = #tpu.dot_dimension_numbers<[1], [0], [0], [1], [0, 0, 1, 1], [], []>} : vector<4x72xf32>, vector<72x128xf32>, vector<4x128xf32> -> vector<4x128xf32>
    %c0_5 = arith.constant 0 : index
    %c0_6 = arith.constant 0 : index
    %7 = vector.load %arg5[%c0_5, %c0_6] : memref<4x128xf32, #tpu.memory_space<vmem>>, vector<4x128xf32>
    %8 = arith.subf %6, %7 : vector<4x128xf32>
    %cst_7 = arith.constant 2.000000e-01 : f32
    %9 = vector.broadcast %cst_7 : f32 to vector<4x128xf32>
    %10 = arith.mulf %9, %8 : vector<4x128xf32>
    %11 = arith.addf %7, %10 : vector<4x128xf32>
    %c0_8 = arith.constant 0 : index
    %c0_9 = arith.constant 0 : index
    %12 = vector.load %arg5[%c0_8, %c0_9] : memref<4x128xf32, #tpu.memory_space<vmem>>, vector<4x128xf32>
    tpu.vector_store %arg5[%c0_8, %c0_9], %11 {strides = array<i32>} : memref<4x128xf32, #tpu.memory_space<vmem>>, vector<4x128xf32>,
    %c0_10 = arith.constant 0 : index
    %c0_11 = arith.constant 0 : index
    %c0_12 = arith.constant 0 : index
    %13 = vector.load %arg4[%c0_10, %c0_11, %c0_12] : memref<1x4x128xf32, #tpu.memory_space<vmem>>, vector<1x4x128xf32>
    %14 = vector.shape_cast %13 : vector<1x4x128xf32> to vector<4x128xf32>
    %15 = vector.shape_cast %11 : vector<4x128xf32> to vector<1x4x128xf32>
    tpu.vector_store %arg4[%c0_10, %c0_11, %c0_12], %15 {strides = array<i32>} : memref<1x4x128xf32, #tpu.memory_space<vmem>>, vector<1x4x128xf32>,
    return
  }
  func.func @transform_0(%arg0: i32) -> (i32, i32, i32) {
    %c0_i32 = arith.constant 0 : i32
    %c0_i32_0 = arith.constant 0 : i32
    %c0_i32_1 = arith.constant 0 : i32
    return %arg0, %c0_i32, %c0_i32_0 : i32, i32, i32
  }
  func.func @transform_1(%arg0: i32) -> (i32, i32) {
    %c0_i32 = arith.constant 0 : i32
    %c0_i32_0 = arith.constant 0 : i32
    %c0_i32_1 = arith.constant 0 : i32
    return %c0_i32, %c0_i32_0 : i32, i32
  }
  func.func @transform_2(%arg0: i32) -> (i32, i32) {
    %c0_i32 = arith.constant 0 : i32
    %c0_i32_0 = arith.constant 0 : i32
    %c0_i32_1 = arith.constant 0 : i32
    return %c0_i32, %c0_i32_0 : i32, i32
  }
  func.func @transform_3(%arg0: i32) -> (i32, i32, i32) {
    %c0_i32 = arith.constant 0 : i32
    %c0_i32_0 = arith.constant 0 : i32
    %c0_i32_1 = arith.constant 0 : i32
    return %arg0, %c0_i32, %c0_i32_0 : i32, i32, i32
  }
}

</mosaic_0001>

<llo_original>
// kernel: dout_sequence.1
$region0: #{dout_sequence.1}
  #allocation0 [shape = 'u32[]', space=smem, size = 0x4, offset = 0x4, fixed_abs, tag = 'smem constant byte address 0x4 - core index']
  #allocation1 [shape = 'u32[144,128]{1,0:T(1,128)}', space=vmem, size = 0x12000, scoped, tag = 'internal scratch']
  #allocation2 [shape = 'f32[4,128]{1,0:T(4,128)}', space=vmem, size = 0x800, scoped, tag = 'scratch operand']
  %s0 = inlined_call_operand.hbm [shape: f32[8,4,72], index: 0, kind: input, shape index: {}]
  %s1 = inlined_call_operand.hbm [shape: f32[72,128], index: 1, kind: input, shape index: {}]
  %s2 = inlined_call_operand.hbm [shape: f32[4,128], index: 2, kind: input, shape index: {}]
  %s3 = inlined_call_operand.hbm [shape: f32[8,4,128], index: 3, kind: output, shape index: {}]
  %s4 = sld [smem:[#allocation0]]
  $region61: #{dout_sequence.1} parent=0
    _
  %s6 = ssub.s32 1, %s4
  %s7 = scalar_select 0, %s6, %s4
  $region1: #{dout_sequence.1} parent=0
    #allocation3 [shape = 'u8[4096]{0}', space=vmem, size = 0x1000, scoped, tag = 'input window, operand 0']
    #allocation4 [shape = 's32[2]{0}', space=sflag, size = 0x8, scoped, tag = 'scoped memory for dout_sequence.1']
    #allocation5 [shape = 's32[2]{0}', space=sflag, size = 0x8, scoped, tag = 'scoped memory for dout_sequence.1']
    #allocation6 [shape = 'u8[36864]{0}', space=vmem, size = 0x9000, scoped, tag = 'input window, operand 1, single buffered']
    #allocation7 [shape = 's32[1]{0}', space=sflag, size = 0x4, scoped, tag = 'scoped memory for dout_sequence.1']
    #allocation8 [shape = 'u8[2048]{0}', space=vmem, size = 0x800, scoped, tag = 'input window, operand 2, single buffered']
    #allocation9 [shape = 'u8[4096]{0}', space=vmem, size = 0x1000, scoped, tag = 'output window, operand 0']
    %8 = vsyncpa [#allocation4], 0
    %s9 = scalar_lea.sflag [#allocation4], 1
    %10 = vsyncpa %s9, 0
    %11 = vsyncpa [#allocation7], 0
    %12 = vsyncpa [#allocation5], 0
    %s13 = scalar_lea.sflag [#allocation5], 1
    %14 = vsyncpa %s13, 0
    loop: start=0, step=1, limit=10
    $region2: #{dout_sequence.1} parent=1 // loop_pre_header
      _
    $region3: #{dout_sequence.1} parent=1 // loop_header
      %s16 = sphi 0, %s20
      %p17 = scmp.ge.s32.totalorder %s16, 10
      %s26 = sphi 0, %s28
      %s29 = sphi 0, %s26
      %s30 = sphi 0, %s29
      %s46 = sphi 0, %s30
      %s50 = sphi 0, %s50
      %s52 = sphi 0, %s50
      %s53 = sphi 0, %s52
      %s67 = sphi 0, %s53
      %s71 = sphi 0, %s71
      %s73 = sphi 0, %s71
      %s74 = sphi 0, %s73
      %s88 = sphi 0, %s74
      %s94 = sphi 0, %s96
      %s97 = sphi 0, %s94
      %s98 = sphi 0, %s97
      %s114 = sphi 0, %s98
    $region4: #{dout_sequence.1} parent=1 // loop_header_branch
      %19 = sbr.rel (%p17) target = $region8
    $region5: #{dout_sequence.1} parent=1 // loop_body
      %s21 = ssub.s32 %s16, 1
      %s22 = ssub.s32 %s16, 2
      %s23 = sadd.s32 %s16, 1
      %s24 = ssub.s32 %s16, %s23
      %p25 = scmp.eq.s32.totalorder %s24, 0
      %s27 = sadd.s32 %s26, 1
      %s28 = scalar_select %p25, %s26, %s27
      %p31 = pneg %p25
      %p32 = scmp.eq.s32.totalorder %s16, 7
      %p33 = por %p31, %p32
      %p34 = scmp.ne.s32.totalorder %s26, %s29
      %p35 = scmp.eq.s32.totalorder %s16, 0
      %p36 = por %p34, %p35
      %p37 = scmp.ne.s32.totalorder %s26, %s29
      %p38 = scmp.eq.s32.totalorder %s21, 7
      %p39 = por %p37, %p38
      %p40 = scmp.ne.s32.totalorder %s29, %s30
      %p41 = scmp.eq.s32.totalorder %s21, 0
      %p42 = por %p40, %p41
      %p43 = scmp.ne.s32.totalorder %s29, %s30
      %p44 = scmp.eq.s32.totalorder %s22, 7
      %p45 = por %p43, %p44
      %p47 = scmp.ne.s32.totalorder %s30, %s46
      %p48 = scmp.eq.s32.totalorder %s22, 0
      %p49 = por %p47, %p48
      %s51 = sadd.s32 %s50, 1
      %p54 = scmp.eq.s32.totalorder %s16, 7
      %p55 = scmp.ne.s32.totalorder %s50, %s52
      %p56 = scmp.eq.s32.totalorder %s16, 0
      %p57 = por %p55, %p56
      %p58 = scmp.ne.s32.totalorder %s50, %s52
      %p59 = scmp.eq.s32.totalorder %s21, 7
      %p60 = por %p58, %p59
      %p61 = scmp.ne.s32.totalorder %s52, %s53
      %p62 = scmp.eq.s32.totalorder %s21, 0
      %p63 = por %p61, %p62
      %p64 = scmp.ne.s32.totalorder %s52, %s53
      %p65 = scmp.eq.s32.totalorder %s22, 7
      %p66 = por %p64, %p65
      %p68 = scmp.ne.s32.totalorder %s53, %s67
      %p69 = scmp.eq.s32.totalorder %s22, 0
      %p70 = por %p68, %p69
      %s72 = sadd.s32 %s71, 1
      %p75 = scmp.eq.s32.totalorder %s16, 7
      %p76 = scmp.ne.s32.totalorder %s71, %s73
      %p77 = scmp.eq.s32.totalorder %s16, 0
      %p78 = por %p76, %p77
      %p79 = scmp.ne.s32.totalorder %s71, %s73
      %p80 = scmp.eq.s32.totalorder %s21, 7
      %p81 = por %p79, %p80
      %p82 = scmp.ne.s32.totalorder %s73, %s74
      %p83 = scmp.eq.s32.totalorder %s21, 0
      %p84 = por %p82, %p83
      %p85 = scmp.ne.s32.totalorder %s73, %s74
      %p86 = scmp.eq.s32.totalorder %s22, 7
      %p87 = por %p85, %p86
      %p89 = scmp.ne.s32.totalorder %s74, %s88
      %p90 = scmp.eq.s32.totalorder %s22, 0
      %p91 = por %p89, %p90
      %s92 = ssub.s32 %s16, %s23
      %p93 = scmp.eq.s32.totalorder %s92, 0
      %s95 = sadd.s32 %s94, 1
      %s96 = scalar_select %p93, %s94, %s95
      %p99 = pneg %p93
      %p100 = scmp.eq.s32.totalorder %s16, 7
      %p101 = por %p99, %p100
      %p102 = scmp.ne.s32.totalorder %s94, %s97
      %p103 = scmp.eq.s32.totalorder %s16, 0
      %p104 = por %p102, %p103
      %p105 = scmp.ne.s32.totalorder %s94, %s97
      %p106 = scmp.eq.s32.totalorder %s21, 7
      %p107 = por %p105, %p106
      %p108 = scmp.ne.s32.totalorder %s97, %s98
      %p109 = scmp.eq.s32.totalorder %s21, 0
      %p110 = por %p108, %p109
      %p111 = scmp.ne.s32.totalorder %s97, %s98
      %p112 = scmp.eq.s32.totalorder %s22, 7
      %p113 = por %p111, %p112
      %p115 = scmp.ne.s32.totalorder %s98, %s114
      %p116 = scmp.eq.s32.totalorder %s22, 0
      %p117 = por %p115, %p116
      %p118 = scmp.le.s32.totalorder 1, %s16
      %p119 = scmp.lt.s32.totalorder %s16, 9
      %p120 = pnand %p118, %p119
      %p121 = pneg %p120
      // Predicated region
      $region9: #{dout_sequence.1} parent=5 // pred_check
        _
      $region10: #{dout_sequence.1} parent=5 // pred_check_branch
        %123 = sbr.rel (%p120) target = $region12
      $region11: #{dout_sequence.1} parent=5 // pred_region
        %s124 = ssub.s32 %s16, 1
        // Predicated region
        $region13: #{dout_sequence.1} parent=11 // pred_check
          %p125 = pneg %p63
        $region14: #{dout_sequence.1} parent=11 // pred_check_branch
          %127 = sbr.rel (%p125) target = $region16
        $region15: #{dout_sequence.1} parent=11 // pred_region
          %s129 = ssub.s32 1152, 1152
          %130 = vsyncadd [#allocation7], %s129
          %s131 = sshll.u32 [#allocation6], 4
          %s132 = int_to_ptr.vmem [resolvable:$true] %s131
          %137 = dma.hbm_to_vmem [thread:$0]  %s1, 1152, %s132, [#allocation7], 128, 128, 8
        $region16: #{dout_sequence.1} parent=11 // pred_fallthru
          _
        // Predicated region
        $region17: #{dout_sequence.1} parent=11 // pred_check
          %p138 = pneg %p84
        $region18: #{dout_sequence.1} parent=11 // pred_check_branch
          %140 = sbr.rel (%p138) target = $region20
        $region19: #{dout_sequence.1} parent=11 // pred_region
          %s142 = ssub.s32 64, 64
          %143 = vsyncadd [#allocation7], %s142
          %s145 = sshll.u32 [#allocation8], 4
          %s146 = int_to_ptr.vmem [resolvable:$true] %s145
          %148 = dma.hbm_to_vmem [thread:$0]  %s2, 64, %s146, [#allocation7]
        $region20: #{dout_sequence.1} parent=11 // pred_fallthru
          _
      $region12: #{dout_sequence.1} parent=5 // pred_fallthru
        _
      %p149 = scmp.lt.s32.totalorder %s16, 8
      // Predicated region
      $region21: #{dout_sequence.1} parent=5 // pred_check
        %p150 = pneg %p149
      $region22: #{dout_sequence.1} parent=5 // pred_check_branch
        %152 = sbr.rel (%p150) target = $region24
      $region23: #{dout_sequence.1} parent=5 // pred_region
        // Predicated region
        $region25: #{dout_sequence.1} parent=23 // pred_check
          %p153 = pneg %p36
        $region26: #{dout_sequence.1} parent=23 // pred_check_branch
          %155 = sbr.rel (%p153) target = $region28
        $region27: #{dout_sequence.1} parent=23 // pred_region
          %s156 = sand.u32 %s26, 1
          %s157 = scalar_lea.sflag [#allocation4], %s156
          %s158 = sand.u32 %s26, 1
          %s159 = smul.addr %s158, 4
          %s160 = scalar_lea.vmem [#allocation3], %s159
          %s162 = ssub.s32 64, 64
          %163 = vsyncadd %s157, %s162
          %s164 = smul.addr %s16, 64
          %s165 = scalar_lea.hbm %s0, %s164
          %s167 = sshll.u32 %s160, 4
          %s168 = int_to_ptr.vmem [resolvable:$true] %s167
          %170 = dma.hbm_to_vmem [thread:$0]  %s165, 64, %s168, %s157
        $region28: #{dout_sequence.1} parent=23 // pred_fallthru
          _
      $region24: #{dout_sequence.1} parent=5 // pred_fallthru
        _
      %p171 = scmp.le.s32.totalorder 1, %s16
      %p172 = scmp.lt.s32.totalorder %s16, 9
      %p173 = pnand %p171, %p172
      %p174 = pneg %p173
      // Predicated region
      $region29: #{dout_sequence.1} parent=5 // pred_check
        _
      $region30: #{dout_sequence.1} parent=5 // pred_check_branch
        %176 = sbr.rel (%p173) target = $region32
      $region31: #{dout_sequence.1} parent=5 // pred_region
        %s177 = ssub.s32 %s16, 1
        %s178 = sand.u32 %s29, 1
        %s179 = scalar_lea.sflag [#allocation4], %s178
        %s180 = sand.u32 %s29, 1
        %s181 = smul.addr %s180, 4
        %s182 = scalar_lea.vmem [#allocation3], %s181
        // Predicated region
        $region33: #{dout_sequence.1} parent=31 // pred_check
          %p183 = pneg %p42
        $region34: #{dout_sequence.1} parent=31 // pred_check_branch
          %185 = sbr.rel (%p183) target = $region36
        $region35: #{dout_sequence.1} parent=31 // pred_region
          %186 = dma.done %s179, 64
        $region36: #{dout_sequence.1} parent=31 // pred_fallthru
          _
        // Predicated region
        $region37: #{dout_sequence.1} parent=31 // pred_check
          %p187 = pneg %p63
        $region38: #{dout_sequence.1} parent=31 // pred_check_branch
          %189 = sbr.rel (%p187) target = $region40
        $region39: #{dout_sequence.1} parent=31 // pred_region
          %190 = dma.done [#allocation7], 1152
        $region40: #{dout_sequence.1} parent=31 // pred_fallthru
          _
        // Predicated region
        $region41: #{dout_sequence.1} parent=31 // pred_check
          %p191 = pneg %p84
        $region42: #{dout_sequence.1} parent=31 // pred_check_branch
          %193 = sbr.rel (%p191) target = $region44
        $region43: #{dout_sequence.1} parent=31 // pred_region
          %194 = dma.done [#allocation7], 64
        $region44: #{dout_sequence.1} parent=31 // pred_fallthru
          _
        %s195 = sand.u32 %s29, 1
        %s196 = scalar_lea.sflag [#allocation4], %s195
        %s197 = sand.u32 %s29, 1
        %s198 = smul.addr %s197, 4
        %s199 = scalar_lea.vmem [#allocation3], %s198
        %p200 = pneg %p42
        %p201 = pneg %p39
        %p202 = pneg %p63
        %p203 = pneg %p60
        %p204 = pneg %p84
        %p205 = pneg %p81
        %p206 = pneg %p110
        %p207 = pneg %p107
        %s208 = sand.u32 %s97, 1
        %s209 = scalar_lea.sflag [#allocation5], %s208
        %s210 = sand.u32 %s97, 1
        %s211 = smul.addr %s210, 4
        %s212 = scalar_lea.vmem [#allocation9], %s211
        %p213 = scmp.eq.s32.totalorder %s21, 0
        // Predicated region
        $region45: #{dout_sequence.1} parent=31 // pred_check
          %p214 = pneg %p213
        $region46: #{dout_sequence.1} parent=31 // pred_check_branch
          %216 = sbr.rel (%p214) target = $region48
        $region47: #{dout_sequence.1} parent=31 // pred_region
          %v217 = vld [vmem:[#allocation8] sm:$0xf]
          %218 = vst [vmem:[#allocation2] sm:$0xf] %v217
        $region48: #{dout_sequence.1} parent=31 // pred_fallthru
          _
        %v219 = vld [vmem:[%s182] sm:$0xf]
        %v220 = vld [vmem:[#allocation6] sm:$0xff]
        %v221 = vld [vmem:[#allocation6 + $0x8] sm:$0xff]
        %v222 = vld [vmem:[#allocation6 + $0x10] sm:$0xff]
        %v223 = vld [vmem:[#allocation6 + $0x18] sm:$0xff]
        %v224 = vld [vmem:[#allocation6 + $0x20] sm:$0xff]
        %v225 = vld [vmem:[#allocation6 + $0x28] sm:$0xff]
        %v226 = vld [vmem:[#allocation6 + $0x30] sm:$0xff]
        %v227 = vld [vmem:[#allocation6 + $0x38] sm:$0xff]
        %v228 = vld [vmem:[#allocation6 + $0x40] sm:$0xff]
        %vm229 = vcmask 588800
        %v231 = vsel %vm229, %v219, 0
        %233 = vmatprep.subr.mxu0 0.0
        %234 = vmatpush1.msra.mxu0 0.0
        %235 = vmatprep.subr.mxu0 0.0
        %236 = vmatpush1.msra.mxu0 0.0
        %237 = vmatprep.subr.mxu0 0.0
        %238 = vmatpush1.msra.mxu0 0.0
        %239 = vmatprep.subr.mxu0 0.0
        %240 = vmatpush1.msra.mxu0 0.0
        %241 = vmatprep.subr.mxu0 0.0
        %242 = vmatpush1.msra.mxu0 0.0
        %243 = vmatprep.subr.mxu0 0.0
        %244 = vmatpush1.msra.mxu0 0.0
        %245 = vmatprep.subr.mxu0 0.0
        %246 = vmatpush1.msra.mxu0 0.0
        %247 = vmatprep.subr.mxu0 0.0
        %248 = vmatpush1.msra.mxu0 %v228
        %249 = vmatprep.subr.mxu0 0.0
        %250 = vmatpush1.msra.mxu0 %v227
        %251 = vmatprep.subr.mxu0 0.0
        %252 = vmatpush1.msra.mxu0 %v226
        %253 = vmatprep.subr.mxu0 0.0
        %254 = vmatpush1.msra.mxu0 %v225
        %255 = vmatprep.subr.mxu0 0.0
        %256 = vmatpush1.msra.mxu0 %v224
        %257 = vmatprep.subr.mxu0 0.0
        %258 = vmatpush1.msra.mxu0 %v223
        %259 = vmatprep.subr.mxu0 0.0
        %260 = vmatpush1.msra.mxu0 %v222
        %261 = vmatprep.subr.mxu0 0.0
        %262 = vmatpush1.msra.mxu0 %v221
        %263 = vmatprep.subr.mxu0 0.0
        %264 = vmatpush1.msra.mxu0 %v220
        %265 = vmatprep.subr.mxu0 0.0
        %266 = vmatpush2.msra.mxu0 0.0
        %267 = vmatprep.subr.mxu0 0.0
        %268 = vmatpush2.msra.mxu0 0.0
        %269 = vmatprep.subr.mxu0 0.0
        %270 = vmatpush2.msra.mxu0 0.0
        %271 = vmatprep.subr.mxu0 0.0
        %272 = vmatpush2.msra.mxu0 0.0
        %273 = vmatprep.subr.mxu0 0.0
        %274 = vmatpush2.msra.mxu0 0.0
        %275 = vmatprep.subr.mxu0 0.0
        %276 = vmatpush2.msra.mxu0 0.0
        %277 = vmatprep.subr.mxu0 0.0
        %278 = vmatpush2.msra.mxu0 0.0
        %279 = vmatprep.subr.mxu0 0.0
        %280 = vmatpush2.msra.mxu0 0.0
        %281 = vmatprep.subr.mxu0 0.0
        %282 = vmatpush2.msra.mxu0 0.0
        %283 = vmatprep.subr.mxu0 0.0
        %284 = vmatpush2.msra.mxu0 0.0
        %285 = vmatprep.subr.mxu0 0.0
        %286 = vmatpush2.msra.mxu0 0.0
        %287 = vmatprep.subr.mxu0 0.0
        %288 = vmatpush2.msra.mxu0 0.0
        %289 = vmatprep.subr.mxu0 0.0
        %290 = vmatpush2.msra.mxu0 0.0
        %291 = vmatprep.subr.mxu0 0.0
        %292 = vmatpush2.msra.mxu0 0.0
        %293 = vmatprep.subr.mxu0 0.0
        %294 = vmatpush2.msra.mxu0 0.0
        %295 = vmatprep.subr.mxu0 0.0
        %296 = vmatpush2.msra.mxu0 0.0
        %297 = vmatprep.mubr.f32.mxu0 0.0
        %298 = vmatmul.mubr.f32.gmra.mxu0 %v231
        %v299 = vpop.f32.mrf.mxu0
        %v300 = vadd.f32 0.0, %v299
        %v301 = vpop.f32.mrf.mxu0
        %302 = vdwg.mxu0
        %v303 = vld [vmem:[#allocation2] sm:$0xf]
        %v304 = vsub.f32 %v300, %v303
        %v305 = vmul.f32 %v304, 0.2
        %v306 = vadd.f32 %v303, %v305
        %307 = vst [vmem:[#allocation2] sm:$0xf] %v306
        %308 = vst [vmem:[%s212] sm:$0xf] %v306
        %s309 = sand.u32 %s97, 1
        %s310 = scalar_lea.sflag [#allocation5], %s309
        %s311 = sand.u32 %s97, 1
        %s312 = smul.addr %s311, 4
        %s313 = scalar_lea.vmem [#allocation9], %s312
        // Predicated region
        $region49: #{dout_sequence.1} parent=31 // pred_check
          %p314 = pneg %p107
        $region50: #{dout_sequence.1} parent=31 // pred_check_branch
          %316 = sbr.rel (%p314) target = $region52
        $region51: #{dout_sequence.1} parent=31 // pred_region
          %s318 = ssub.s32 64, 64
          %319 = vsyncadd %s310, %s318
          %s320 = smul.addr %s21, 64
          %s321 = scalar_lea.hbm %s3, %s320
          %s323 = sshll.u32 %s313, 4
          %s324 = int_to_ptr.vmem [resolvable:$true] %s323
          %326 = dma.vmem_to_hbm [thread:$0]  %s324, 64, %s321, %s310
        $region52: #{dout_sequence.1} parent=31 // pred_fallthru
          _
      $region32: #{dout_sequence.1} parent=5 // pred_fallthru
        _
      %p327 = scmp.le.s32.totalorder 2, %s16
      // Predicated region
      $region53: #{dout_sequence.1} parent=5 // pred_check
        %p328 = pneg %p327
      $region54: #{dout_sequence.1} parent=5 // pred_check_branch
        %330 = sbr.rel (%p328) target = $region56
      $region55: #{dout_sequence.1} parent=5 // pred_region
        %s331 = ssub.s32 %s16, 2
        // Predicated region
        $region57: #{dout_sequence.1} parent=55 // pred_check
          %p332 = pneg %p113
        $region58: #{dout_sequence.1} parent=55 // pred_check_branch
          %334 = sbr.rel (%p332) target = $region60
        $region59: #{dout_sequence.1} parent=55 // pred_region
          %s335 = sand.u32 %s98, 1
          %s336 = scalar_lea.sflag [#allocation5], %s335
          %s337 = sand.u32 %s98, 1
          %s338 = smul.addr %s337, 4
          %s339 = scalar_lea.vmem [#allocation9], %s338
          %340 = dma.done %s336, 64
        $region60: #{dout_sequence.1} parent=55 // pred_fallthru
          _
      $region56: #{dout_sequence.1} parent=5 // pred_fallthru
        _
    $region6: #{dout_sequence.1} parent=1 // loop_footer
      %s20 = sadd.s32 1, %s16
    $region7: #{dout_sequence.1} parent=1 // loop_footer_branch
      %15 = sbr.rel target = $region3
    $region8: #{dout_sequence.1} parent=1 // loop_exit
      _
    %341 = vsyncpa [#allocation4], 1
    %s342 = scalar_lea.sflag [#allocation4], 1
    %343 = vsyncpa %s342, 1
    %344 = vsyncpa [#allocation7], 1
    %345 = vsyncpa [#allocation5], 1
    %s346 = scalar_lea.sflag [#allocation5], 1
    %347 = vsyncpa %s346, 1

</llo_original>
